<compile_context>
chip_gen: v7x
topology: tpu7x:2x2x1
jax: 0.10.0
libtpu: 0.0.40
codegen_flags: <defaults>
</compile_context>

<pallas_src>
import functools

import jax
import jax.numpy as jnp
from jax.experimental import pallas as pl
from jax.experimental.pallas import tpu as pltpu

LANE = 128
SUBLANE = 8


def _round_up(x, m):
    return (x + m - 1) // m * m


# --------------------------------------------------------------------------- #
# Kernel
# --------------------------------------------------------------------------- #
def decoder_kernel(x_ref, w_in_ref, b_in_ref, w_h_ref, b_h_ref,
                   w_out_ref, b_out_ref, o_ref, *, hidden_layers):
    """One batch-tile of the whole Decoder forward (BN pre-folded, lane-padded H)."""
    x = x_ref[...]

    # input block: Linear (+ folded BN affine) -> ReLU  (Dropout = identity in eval)
    h = jnp.dot(x, w_in_ref[...], preferred_element_type=jnp.float32) + b_in_ref[...]
    h = jnp.maximum(h, 0.0)

    # residual hidden blocks, statically unrolled: h = h + ReLU(h @ W'_i + t_i)
    for i in range(hidden_layers):          # static Python unroll -> static ref slices
        y = jnp.dot(h, w_h_ref[i], preferred_element_type=jnp.float32) + b_h_ref[i]
        h = h + jnp.maximum(y, 0.0)

    # last layer: plain Linear, written at true output width (masked vst, no padding)
    out = jnp.dot(h, w_out_ref[...], preferred_element_type=jnp.float32) + b_out_ref[...]
    o_ref[...] = out.astype(o_ref.dtype)


# --------------------------------------------------------------------------- #
# Parameter folding / padding (done once, outside the kernel)
# --------------------------------------------------------------------------- #
def _fold_and_pad(params):
    """Fold BN affine into weights; zero-pad the *hidden* feature dim to 128 lanes.

    The output dim is left unpadded (the kernel stores at true width).
    Padded hidden lanes stay exactly zero through ReLU/residual (bias pads are 0).
    """
    w_in, b_in, s_in, t_in, w_h, s_h, t_h, w_out, b_out = params
    hidden_dim = w_in.shape[1]
    h_pad = _round_up(hidden_dim, LANE)

    # Fold BatchNorm (eval) affine into the preceding Linear.
    w_in_f = w_in * s_in                       # (code, H) * (1, H)  -> column scale
    b_in_f = b_in * s_in + t_in                # (1, H)
    w_h_f = w_h * s_h                          # (L, H, H) * (L, 1, H)
    b_h_f = t_h                                # (L, 1, H)  (Linear bias=False)

    def pad_last(a, new_last):
        pad = [(0, 0)] * (a.ndim - 1) + [(0, new_last - a.shape[-1])]
        return jnp.pad(a, pad)

    w_in_p = pad_last(w_in_f, h_pad)                                   # (code, Hp)
    b_in_p = pad_last(b_in_f, h_pad)                                   # (1, Hp)
    w_h_p = pad_last(jnp.pad(w_h_f, ((0, 0), (0, h_pad - hidden_dim), (0, 0))),
                     h_pad)                                            # (L, Hp, Hp)
    b_h_p = pad_last(b_h_f, h_pad)                                     # (L, 1, Hp)
    w_out_p = jnp.pad(w_out, ((0, h_pad - hidden_dim), (0, 0)))        # (Hp, Out)
    b_out_p = b_out                                                    # (1, Out)

    return (w_in_p, b_in_p, w_h_p, b_h_p, w_out_p, b_out_p), h_pad


# --------------------------------------------------------------------------- #
# Wrapper
# --------------------------------------------------------------------------- #
def decoder_forward(x, params, tile_b=None):
    batch, code_dim = x.shape
    hidden_layers = params[4].shape[0]
    output_dim = params[7].shape[1]

    (w_in_p, b_in_p, w_h_p, b_h_p, w_out_p, b_out_p), h_pad = _fold_and_pad(params)
    num_layers = w_h_p.shape[0]

    # Batch tiling: large tiles amortize per-step overhead, but aim for >=2 grid
    # steps when batch allows so the "parallel" axis shards across v7x's two TCs.
    if tile_b is None:
        tile_b = max(SUBLANE, min(1024, _round_up(pl.cdiv(batch, 2), SUBLANE)))
    grid = (pl.cdiv(batch, tile_b),)   # no wrapper-side batch pad; ragged tail is masked

    kernel = functools.partial(decoder_kernel, hidden_layers=hidden_layers)

    # Advisory cost estimate for the XLA scheduler.
    weight_elems = (code_dim * h_pad + h_pad
                    + num_layers * (h_pad * h_pad + h_pad)
                    + h_pad * output_dim + output_dim)
    flops = 2 * batch * (code_dim * h_pad + num_layers * h_pad * h_pad
                         + h_pad * output_dim)
    bytes_accessed = 4 * (batch * code_dim + weight_elems + batch * output_dim)
    cost = pl.CostEstimate(flops=flops, transcendentals=0,
                           bytes_accessed=bytes_accessed)

    # VMEM footprint (double-buffered x/out tiles + resident weights + headroom);
    # never drop below the 32 MiB default scoped limit.
    vmem_bytes = 4 * (2 * tile_b * code_dim + 2 * tile_b * output_dim
                      + 2 * weight_elems + 4 * tile_b * h_pad)
    vmem_limit = max(32 * 1024 * 1024, min(128 * 1024 * 1024, 2 * vmem_bytes))

    out = pl.pallas_call(
        kernel,
        out_shape=jax.ShapeDtypeStruct((batch, output_dim), jnp.float32),
        grid_spec=pltpu.PrefetchScalarGridSpec(
            num_scalar_prefetch=0,
            grid=grid,
            in_specs=[
                # x: one batch tile per grid step (auto double-buffered)
                pl.BlockSpec((tile_b, code_dim), lambda i: (i, 0)),
                # weights / biases: constant index maps -> resident across tiles
                pl.BlockSpec((code_dim, h_pad), lambda i: (0, 0)),
                pl.BlockSpec((1, h_pad), lambda i: (0, 0)),
                pl.BlockSpec((num_layers, h_pad, h_pad), lambda i: (0, 0, 0)),
                pl.BlockSpec((num_layers, 1, h_pad), lambda i: (0, 0, 0)),
                pl.BlockSpec((h_pad, output_dim), lambda i: (0, 0)),
                pl.BlockSpec((1, output_dim), lambda i: (0, 0)),
            ],
            out_specs=pl.BlockSpec((tile_b, output_dim), lambda i: (i, 0)),
        ),
        compiler_params=pltpu.CompilerParams(
            dimension_semantics=("parallel",),
            vmem_limit_bytes=int(vmem_limit),
        ),
        cost_estimate=cost,
    )(x, w_in_p, b_in_p, w_h_p, b_h_p, w_out_p, b_out_p)

    return out


# --------------------------------------------------------------------------- #
# Synthetic parameters + pure-JAX reference
# --------------------------------------------------------------------------- #
def make_params(key, code_dim, hidden_dim, output_dim, hidden_layers, eps=1e-5):
    """Deterministic synthetic init mirroring the module's shapes.

    Linear weights use xavier-uniform; BatchNorm1d params use the PyTorch init
    (gamma=1, beta=0, running_mean=0, running_var=1) expressed as scale/shift.
    Weights are stored (in, out); transpose when importing real nn.Linear weights.
    """
    def xavier(key, fan_in, fan_out):
        bound = (6.0 / (fan_in + fan_out)) ** 0.5
        return jax.random.uniform(key, (fan_in, fan_out), jnp.float32, -bound, bound)

    keys = jax.random.split(key, 4 + hidden_layers)

    # input block
    w_in = xavier(keys[0], code_dim, hidden_dim)                      # [code, hidden]
    b_in = jax.random.uniform(keys[1], (1, hidden_dim), jnp.float32,
                              -1.0 / code_dim ** 0.5, 1.0 / code_dim ** 0.5)
    gamma = jnp.ones((1, hidden_dim), jnp.float32)
    beta = jnp.zeros((1, hidden_dim), jnp.float32)
    run_mean = jnp.zeros((1, hidden_dim), jnp.float32)
    run_var = jnp.ones((1, hidden_dim), jnp.float32)
    s_in = gamma / jnp.sqrt(run_var + eps)
    t_in = beta - run_mean * s_in

    # residual hidden blocks (Linear bias=False because norm is BatchNorm1d)
    w_h = jnp.stack([xavier(keys[2 + i], hidden_dim, hidden_dim)
                     for i in range(hidden_layers)], axis=0)          # [L, hidden, hidden]
    s_h = jnp.broadcast_to(s_in[None], (hidden_layers, 1, hidden_dim))
    t_h = jnp.broadcast_to(t_in[None], (hidden_layers, 1, hidden_dim))

    # last layer
    w_out = xavier(keys[2 + hidden_layers], hidden_dim, output_dim)   # [hidden, out]
    b_out = jax.random.uniform(keys[3 + hidden_layers], (1, output_dim), jnp.float32,
                               -1.0 / hidden_dim ** 0.5, 1.0 / hidden_dim ** 0.5)

    return (w_in, b_in, s_in, t_in, w_h, s_h, t_h, w_out, b_out)


def decoder_reference(x, params):
    """Pure-JAX reference (un-folded BN) for correctness checking."""
    (w_in, b_in, s_in, t_in, w_h, s_h, t_h, w_out, b_out) = params
    h = jnp.maximum((x @ w_in + b_in) * s_in + t_in, 0.0)
    for i in range(w_h.shape[0]):
        h = h + jnp.maximum((h @ w_h[i]) * s_h[i] + t_h[i], 0.0)
    return h @ w_out + b_out


if __name__ == "__main__":
    key = jax.random.PRNGKey(0)

    # Case 1: small shapes consistent with the module's forward (single grid step).
    batch, code_dim, hidden_dim, output_dim, hidden_layers = 8, 16, 32, 24, 4
    k_x, k_p = jax.random.split(key)
    x = jax.random.normal(k_x, (batch, code_dim), jnp.float32)
    params = make_params(k_p, code_dim, hidden_dim, output_dim, hidden_layers)
    out = jax.block_until_ready(decoder_forward(x, params))
    ref = decoder_reference(x, params)
    assert out.shape == (batch, output_dim)
    assert jnp.allclose(out, ref, atol=1e-3, rtol=1e-3), "mismatch vs reference (case 1)"

    # Case 2: module default widths, non-multiple batch -> 2 grid steps + ragged
    # final tile (exercises the masked boundary writes introduced by dropping the
    # wrapper-side batch pad).
    batch2, code2, hid2, out2, layers2 = 100, 16, 20, 25, 10
    k_x2, k_p2 = jax.random.split(jax.random.PRNGKey(1))
    x2 = jax.random.normal(k_x2, (batch2, code2), jnp.float32)
    params2 = make_params(k_p2, code2, hid2, out2, layers2)
    o2 = jax.block_until_ready(decoder_forward(x2, params2))
    r2 = decoder_reference(x2, params2)
    assert o2.shape == (batch2, out2)
    assert jnp.allclose(o2, r2, atol=1e-3, rtol=1e-3), "mismatch vs reference (case 2)"

    print("KERNEL_OK")
</pallas_src>

<mosaic_0001>
module attributes {stable_mosaic.version = 11 : i64} {
  func.func @decoder_kernel(%arg0: i32, %arg1: memref<8x16xf32, #tpu.memory_space<vmem>>, %arg2: memref<16x128xf32, #tpu.memory_space<vmem>>, %arg3: memref<1x128xf32, #tpu.memory_space<vmem>>, %arg4: memref<4x128x128xf32, #tpu.memory_space<vmem>>, %arg5: memref<4x1x128xf32, #tpu.memory_space<vmem>>, %arg6: memref<128x24xf32, #tpu.memory_space<vmem>>, %arg7: memref<1x24xf32, #tpu.memory_space<vmem>>, %arg8: memref<8x24xf32, #tpu.memory_space<vmem>>) attributes {dimension_semantics = [#tpu.dimension_semantics<parallel>], iteration_bounds = array<i64: 1>, scalar_prefetch = 0 : i64, scratch_operands = 0 : i64, tpu.core_type = #tpu.core_type<tc>, window_params = [{transform_indices = @transform_0, window_bounds = array<i64: 8, 16>}, {pipeline_mode = #tpu.pipeline_mode<synchronous>, transform_indices = @transform_1, window_bounds = array<i64: 16, 128>}, {pipeline_mode = #tpu.pipeline_mode<synchronous>, transform_indices = @transform_2, window_bounds = array<i64: 1, 128>}, {pipeline_mode = #tpu.pipeline_mode<synchronous>, transform_indices = @transform_3, window_bounds = array<i64: 4, 128, 128>}, {pipeline_mode = #tpu.pipeline_mode<synchronous>, transform_indices = @transform_4, window_bounds = array<i64: 4, 1, 128>}, {pipeline_mode = #tpu.pipeline_mode<synchronous>, transform_indices = @transform_5, window_bounds = array<i64: 128, 24>}, {pipeline_mode = #tpu.pipeline_mode<synchronous>, transform_indices = @transform_6, window_bounds = array<i64: 1, 24>}, {transform_indices = @transform_7, window_bounds = array<i64: 8, 24>}]} {
    %c0 = arith.constant 0 : index
    %c0_0 = arith.constant 0 : index
    %0 = vector.load %arg1[%c0, %c0_0] : memref<8x16xf32, #tpu.memory_space<vmem>>, vector<8x16xf32>
    %c0_1 = arith.constant 0 : index
    %c0_2 = arith.constant 0 : index
    %1 = vector.load %arg2[%c0_1, %c0_2] : memref<16x128xf32, #tpu.memory_space<vmem>>, vector<16x128xf32>
    %cst = arith.constant dense<0.000000e+00> : vector<8x128xf32>
    %2 = tpu.matmul %0, %1, %cst {dimension_numbers = #tpu.dot_dimension_numbers<[1], [0], [0], [1], [0, 0, 1, 1], [], []>} : vector<8x16xf32>, vector<16x128xf32>, vector<8x128xf32> -> vector<8x128xf32>
    %c0_3 = arith.constant 0 : index
    %c0_4 = arith.constant 0 : index
    %3 = vector.load %arg3[%c0_3, %c0_4] : memref<1x128xf32, #tpu.memory_space<vmem>>, vector<1x128xf32>
    %4 = vector.broadcast %3 : vector<1x128xf32> to vector<8x128xf32>
    %5 = arith.addf %2, %4 : vector<8x128xf32>
    %cst_5 = arith.constant 0.000000e+00 : f32
    %6 = vector.broadcast %cst_5 : f32 to vector<8x128xf32>
    %7 = arith.maximumf %5, %6 : vector<8x128xf32>
    %c0_6 = arith.constant 0 : index
    %c0_7 = arith.constant 0 : index
    %c0_8 = arith.constant 0 : index
    %8 = vector.load %arg4[%c0_6, %c0_7, %c0_8] : memref<4x128x128xf32, #tpu.memory_space<vmem>>, vector<1x128x128xf32>
    %9 = vector.shape_cast %8 : vector<1x128x128xf32> to vector<128x128xf32>
    %cst_9 = arith.constant dense<0.000000e+00> : vector<8x128xf32>
    %10 = tpu.matmul %7, %9, %cst_9 {dimension_numbers = #tpu.dot_dimension_numbers<[1], [0], [0], [1], [0, 0, 1, 1], [], []>} : vector<8x128xf32>, vector<128x128xf32>, vector<8x128xf32> -> vector<8x128xf32>
    %c0_10 = arith.constant 0 : index
    %c0_11 = arith.constant 0 : index
    %c0_12 = arith.constant 0 : index
    %11 = vector.load %arg5[%c0_10, %c0_11, %c0_12] : memref<4x1x128xf32, #tpu.memory_space<vmem>>, vector<1x1x128xf32>
    %12 = vector.shape_cast %11 : vector<1x1x128xf32> to vector<1x128xf32>
    %13 = vector.broadcast %12 : vector<1x128xf32> to vector<8x128xf32>
    %14 = arith.addf %10, %13 : vector<8x128xf32>
    %cst_13 = arith.constant 0.000000e+00 : f32
    %15 = vector.broadcast %cst_13 : f32 to vector<8x128xf32>
    %16 = arith.maximumf %14, %15 : vector<8x128xf32>
    %17 = arith.addf %7, %16 : vector<8x128xf32>
    %c1 = arith.constant 1 : index
    %c0_14 = arith.constant 0 : index
    %c0_15 = arith.constant 0 : index
    %18 = vector.load %arg4[%c1, %c0_14, %c0_15] : memref<4x128x128xf32, #tpu.memory_space<vmem>>, vector<1x128x128xf32>
    %19 = vector.shape_cast %18 : vector<1x128x128xf32> to vector<128x128xf32>
    %cst_16 = arith.constant dense<0.000000e+00> : vector<8x128xf32>
    %20 = tpu.matmul %17, %19, %cst_16 {dimension_numbers = #tpu.dot_dimension_numbers<[1], [0], [0], [1], [0, 0, 1, 1], [], []>} : vector<8x128xf32>, vector<128x128xf32>, vector<8x128xf32> -> vector<8x128xf32>
    %c1_17 = arith.constant 1 : index
    %c0_18 = arith.constant 0 : index
    %c0_19 = arith.constant 0 : index
    %21 = vector.load %arg5[%c1_17, %c0_18, %c0_19] : memref<4x1x128xf32, #tpu.memory_space<vmem>>, vector<1x1x128xf32>
    %22 = vector.shape_cast %21 : vector<1x1x128xf32> to vector<1x128xf32>
    %23 = vector.broadcast %22 : vector<1x128xf32> to vector<8x128xf32>
    %24 = arith.addf %20, %23 : vector<8x128xf32>
    %cst_20 = arith.constant 0.000000e+00 : f32
    %25 = vector.broadcast %cst_20 : f32 to vector<8x128xf32>
    %26 = arith.maximumf %24, %25 : vector<8x128xf32>
    %27 = arith.addf %17, %26 : vector<8x128xf32>
    %c2 = arith.constant 2 : index
    %c0_21 = arith.constant 0 : index
    %c0_22 = arith.constant 0 : index
    %28 = vector.load %arg4[%c2, %c0_21, %c0_22] : memref<4x128x128xf32, #tpu.memory_space<vmem>>, vector<1x128x128xf32>
    %29 = vector.shape_cast %28 : vector<1x128x128xf32> to vector<128x128xf32>
    %cst_23 = arith.constant dense<0.000000e+00> : vector<8x128xf32>
    %30 = tpu.matmul %27, %29, %cst_23 {dimension_numbers = #tpu.dot_dimension_numbers<[1], [0], [0], [1], [0, 0, 1, 1], [], []>} : vector<8x128xf32>, vector<128x128xf32>, vector<8x128xf32> -> vector<8x128xf32>
    %c2_24 = arith.constant 2 : index
    %c0_25 = arith.constant 0 : index
    %c0_26 = arith.constant 0 : index
    %31 = vector.load %arg5[%c2_24, %c0_25, %c0_26] : memref<4x1x128xf32, #tpu.memory_space<vmem>>, vector<1x1x128xf32>
    %32 = vector.shape_cast %31 : vector<1x1x128xf32> to vector<1x128xf32>
    %33 = vector.broadcast %32 : vector<1x128xf32> to vector<8x128xf32>
    %34 = arith.addf %30, %33 : vector<8x128xf32>
    %cst_27 = arith.constant 0.000000e+00 : f32
    %35 = vector.broadcast %cst_27 : f32 to vector<8x128xf32>
    %36 = arith.maximumf %34, %35 : vector<8x128xf32>
    %37 = arith.addf %27, %36 : vector<8x128xf32>
    %c3 = arith.constant 3 : index
    %c0_28 = arith.constant 0 : index
    %c0_29 = arith.constant 0 : index
    %38 = vector.load %arg4[%c3, %c0_28, %c0_29] : memref<4x128x128xf32, #tpu.memory_space<vmem>>, vector<1x128x128xf32>
    %39 = vector.shape_cast %38 : vector<1x128x128xf32> to vector<128x128xf32>
    %cst_30 = arith.constant dense<0.000000e+00> : vector<8x128xf32>
    %40 = tpu.matmul %37, %39, %cst_30 {dimension_numbers = #tpu.dot_dimension_numbers<[1], [0], [0], [1], [0, 0, 1, 1], [], []>} : vector<8x128xf32>, vector<128x128xf32>, vector<8x128xf32> -> vector<8x128xf32>
    %c3_31 = arith.constant 3 : index
    %c0_32 = arith.constant 0 : index
    %c0_33 = arith.constant 0 : index
    %41 = vector.load %arg5[%c3_31, %c0_32, %c0_33] : memref<4x1x128xf32, #tpu.memory_space<vmem>>, vector<1x1x128xf32>
    %42 = vector.shape_cast %41 : vector<1x1x128xf32> to vector<1x128xf32>
    %43 = vector.broadcast %42 : vector<1x128xf32> to vector<8x128xf32>
    %44 = arith.addf %40, %43 : vector<8x128xf32>
    %cst_34 = arith.constant 0.000000e+00 : f32
    %45 = vector.broadcast %cst_34 : f32 to vector<8x128xf32>
    %46 = arith.maximumf %44, %45 : vector<8x128xf32>
    %47 = arith.addf %37, %46 : vector<8x128xf32>
    %c0_35 = arith.constant 0 : index
    %c0_36 = arith.constant 0 : index
    %48 = vector.load %arg6[%c0_35, %c0_36] : memref<128x24xf32, #tpu.memory_space<vmem>>, vector<128x24xf32>
    %cst_37 = arith.constant dense<0.000000e+00> : vector<8x24xf32>
    %49 = tpu.matmul %47, %48, %cst_37 {dimension_numbers = #tpu.dot_dimension_numbers<[1], [0], [0], [1], [0, 0, 1, 1], [], []>} : vector<8x128xf32>, vector<128x24xf32>, vector<8x24xf32> -> vector<8x24xf32>
    %c0_38 = arith.constant 0 : index
    %c0_39 = arith.constant 0 : index
    %50 = vector.load %arg7[%c0_38, %c0_39] : memref<1x24xf32, #tpu.memory_space<vmem>>, vector<1x24xf32>
    %51 = vector.broadcast %50 : vector<1x24xf32> to vector<8x24xf32>
    %52 = arith.addf %49, %51 : vector<8x24xf32>
    %c0_40 = arith.constant 0 : index
    %c0_41 = arith.constant 0 : index
    %53 = vector.load %arg8[%c0_40, %c0_41] : memref<8x24xf32, #tpu.memory_space<vmem>>, vector<8x24xf32>
    tpu.vector_store %arg8[%c0_40, %c0_41], %52 {strides = array<i32>} : memref<8x24xf32, #tpu.memory_space<vmem>>, vector<8x24xf32>,
    return
  }
  func.func @transform_0(%arg0: i32) -> (i32, i32) {
    %c0_i32 = arith.constant 0 : i32
    %c0_i32_0 = arith.constant 0 : i32
    return %arg0, %c0_i32 : i32, i32
  }
  func.func @transform_1(%arg0: i32) -> (i32, i32) {
    %c0_i32 = arith.constant 0 : i32
    %c0_i32_0 = arith.constant 0 : i32
    %c0_i32_1 = arith.constant 0 : i32
    return %c0_i32, %c0_i32_0 : i32, i32
  }
  func.func @transform_2(%arg0: i32) -> (i32, i32) {
    %c0_i32 = arith.constant 0 : i32
    %c0_i32_0 = arith.constant 0 : i32
    %c0_i32_1 = arith.constant 0 : i32
    return %c0_i32, %c0_i32_0 : i32, i32
  }
  func.func @transform_3(%arg0: i32) -> (i32, i32, i32) {
    %c0_i32 = arith.constant 0 : i32
    %c0_i32_0 = arith.constant 0 : i32
    %c0_i32_1 = arith.constant 0 : i32
    %c0_i32_2 = arith.constant 0 : i32
    return %c0_i32, %c0_i32_0, %c0_i32_1 : i32, i32, i32
  }
  func.func @transform_4(%arg0: i32) -> (i32, i32, i32) {
    %c0_i32 = arith.constant 0 : i32
    %c0_i32_0 = arith.constant 0 : i32
    %c0_i32_1 = arith.constant 0 : i32
    %c0_i32_2 = arith.constant 0 : i32
    return %c0_i32, %c0_i32_0, %c0_i32_1 : i32, i32, i32
  }
  func.func @transform_5(%arg0: i32) -> (i32, i32) {
    %c0_i32 = arith.constant 0 : i32
    %c0_i32_0 = arith.constant 0 : i32
    %c0_i32_1 = arith.constant 0 : i32
    return %c0_i32, %c0_i32_0 : i32, i32
  }
  func.func @transform_6(%arg0: i32) -> (i32, i32) {
    %c0_i32 = arith.constant 0 : i32
    %c0_i32_0 = arith.constant 0 : i32
    %c0_i32_1 = arith.constant 0 : i32
    return %c0_i32, %c0_i32_0 : i32, i32
  }
  func.func @transform_7(%arg0: i32) -> (i32, i32) {
    %c0_i32 = arith.constant 0 : i32
    %c0_i32_0 = arith.constant 0 : i32
    return %arg0, %c0_i32 : i32, i32
  }
}

</mosaic_0001>

<llo_original>
// kernel: tpu_custom_call.1
$region0: #{tpu_custom_call.1}
  #allocation0 [shape = 'u32[]', space=smem, size = 0x4, offset = 0x4, fixed_abs, tag = 'smem constant byte address 0x4 - core index']
  #allocation1 [shape = 'u32[144,128]{1,0:T(1,128)}', space=vmem, size = 0x12000, scoped, tag = 'internal scratch']
  %s0 = inlined_call_operand.vmem [shape: f32[8,16], index: 0, kind: input, shape index: {}]
  %s1 = inlined_call_operand.vmem [shape: f32[16,128], index: 1, kind: input, shape index: {}]
  %s2 = inlined_call_operand.vmem [shape: f32[1,128], index: 2, kind: input, shape index: {}]
  %s3 = inlined_call_operand.hbm [shape: f32[4,128,128], index: 3, kind: input, shape index: {}]
  %s4 = inlined_call_operand.vmem [shape: f32[4,1,128], index: 4, kind: input, shape index: {}]
  %s5 = inlined_call_operand.vmem [shape: f32[128,24], index: 5, kind: input, shape index: {}]
  %s6 = inlined_call_operand.vmem [shape: f32[1,24], index: 6, kind: input, shape index: {}]
  %s7 = inlined_call_operand.hbm [shape: f32[8,24], index: 7, kind: output, shape index: {}]
  %s8 = sld [smem:[#allocation0]]
  $region42: #{tpu_custom_call.1} parent=0
    _
  %s10 = ssub.s32 1, %s8
  %s11 = scalar_select 0, %s10, %s8
  $region1: #{tpu_custom_call.1} parent=0
    #allocation2 [shape = 'u8[262144]{0}', space=vmem, size = 0x40000, scoped, tag = 'input window, operand 3, single buffered']
    #allocation3 [shape = 's32[1]{0}', space=sflag, size = 0x4, scoped, tag = 'scoped memory for tpu_custom_call.1']
    #allocation4 [shape = 's32[1]{0}', space=sflag, size = 0x4, scoped, tag = 'scoped memory for tpu_custom_call.1']
    #allocation5 [shape = 'u8[4096]{0}', space=vmem, size = 0x1000, scoped, tag = 'output window, operand 0, single buffered']
    %12 = vsyncpa [#allocation3], 0
    %13 = vsyncpa [#allocation4], 0
    // Predicated region
    $region2: #{tpu_custom_call.1} parent=1 // pred_check
      _
    $region3: #{tpu_custom_call.1} parent=1 // pred_check_branch
      %15 = sbr.rel (0) target = $region5
    $region4: #{tpu_custom_call.1} parent=1 // pred_region
      _
    $region5: #{tpu_custom_call.1} parent=1 // pred_fallthru
      _
    // Predicated region
    $region6: #{tpu_custom_call.1} parent=1 // pred_check
      _
    $region7: #{tpu_custom_call.1} parent=1 // pred_check_branch
      %17 = sbr.rel (0) target = $region9
    $region8: #{tpu_custom_call.1} parent=1 // pred_region
      _
    $region9: #{tpu_custom_call.1} parent=1 // pred_fallthru
      _
    // Predicated region
    $region10: #{tpu_custom_call.1} parent=1 // pred_check
      _
    $region11: #{tpu_custom_call.1} parent=1 // pred_check_branch
      %19 = sbr.rel (0) target = $region13
    $region12: #{tpu_custom_call.1} parent=1 // pred_region
      _
    $region13: #{tpu_custom_call.1} parent=1 // pred_fallthru
      _
    // Predicated region
    $region14: #{tpu_custom_call.1} parent=1 // pred_check
      _
    $region15: #{tpu_custom_call.1} parent=1 // pred_check_branch
      %21 = sbr.rel (0) target = $region17
    $region16: #{tpu_custom_call.1} parent=1 // pred_region
      %s23 = ssub.s32 8192, 8192
      %24 = vsyncadd [#allocation3], %s23
      %s25 = sshll.u32 [#allocation2], 4
      %s26 = int_to_ptr.vmem [resolvable:$true] %s25
      %31 = dma.hbm_to_vmem [thread:$0]  %s3, 8192, %s26, [#allocation3], 128, 128, 8
    $region17: #{tpu_custom_call.1} parent=1 // pred_fallthru
      _
    // Predicated region
    $region18: #{tpu_custom_call.1} parent=1 // pred_check
      _
    $region19: #{tpu_custom_call.1} parent=1 // pred_check_branch
      %33 = sbr.rel (0) target = $region21
    $region20: #{tpu_custom_call.1} parent=1 // pred_region
      _
    $region21: #{tpu_custom_call.1} parent=1 // pred_fallthru
      _
    // Predicated region
    $region22: #{tpu_custom_call.1} parent=1 // pred_check
      _
    $region23: #{tpu_custom_call.1} parent=1 // pred_check_branch
      %35 = sbr.rel (0) target = $region25
    $region24: #{tpu_custom_call.1} parent=1 // pred_region
      _
    $region25: #{tpu_custom_call.1} parent=1 // pred_fallthru
      _
    // Predicated region
    $region26: #{tpu_custom_call.1} parent=1 // pred_check
      _
    $region27: #{tpu_custom_call.1} parent=1 // pred_check_branch
      %37 = sbr.rel (0) target = $region29
    $region28: #{tpu_custom_call.1} parent=1 // pred_region
      _
    $region29: #{tpu_custom_call.1} parent=1 // pred_fallthru
      _
    // Predicated region
    $region30: #{tpu_custom_call.1} parent=1 // pred_check
      _
    $region31: #{tpu_custom_call.1} parent=1 // pred_check_branch
      %39 = sbr.rel (0) target = $region33
    $region32: #{tpu_custom_call.1} parent=1 // pred_region
      %40 = dma.done [#allocation3], 8192
    $region33: #{tpu_custom_call.1} parent=1 // pred_fallthru
      _
    %v41 = vld [vmem:[%s0] sm:$0xff]
    %v42 = vld [vmem:[%s1] sm:$0xff]
    %v43 = vld [vmem:[%s1 + $0x8] sm:$0xff]
    %v44 = vld [vmem:[%s2] sm:$0x1]
    %v46 = vlaneseq
    %v47 = vshrl.u32 %v46, 7
    %v48 = vsub.s32 0, %v47
    %v49 = vrot.slane %v44, %v48
    %vm51 = vcmask 130048
    %v53 = vsel %vm51, %v41, 0
    %55 = vmatprep.subr.mxu0 0.0
    %56 = vmatpush1.msra.mxu0 %v42
    %57 = vmatprep.subr.mxu0 0.0
    %58 = vmatpush1.msra.mxu0 %v43
    %59 = vmatprep.subr.mxu0 0.0
    %60 = vmatpush1.msra.mxu0 0.0
    %61 = vmatprep.subr.mxu0 0.0
    %62 = vmatpush1.msra.mxu0 0.0
    %63 = vmatprep.subr.mxu0 0.0
    %64 = vmatpush1.msra.mxu0 0.0
    %65 = vmatprep.subr.mxu0 0.0
    %66 = vmatpush1.msra.mxu0 0.0
    %67 = vmatprep.subr.mxu0 0.0
    %68 = vmatpush1.msra.mxu0 0.0
    %69 = vmatprep.subr.mxu0 0.0
    %70 = vmatpush1.msra.mxu0 0.0
    %71 = vmatprep.subr.mxu0 0.0
    %72 = vmatpush1.msra.mxu0 0.0
    %73 = vmatprep.subr.mxu0 0.0
    %74 = vmatpush1.msra.mxu0 0.0
    %75 = vmatprep.subr.mxu0 0.0
    %76 = vmatpush1.msra.mxu0 0.0
    %77 = vmatprep.subr.mxu0 0.0
    %78 = vmatpush1.msra.mxu0 0.0
    %79 = vmatprep.subr.mxu0 0.0
    %80 = vmatpush1.msra.mxu0 0.0
    %81 = vmatprep.subr.mxu0 0.0
    %82 = vmatpush1.msra.mxu0 0.0
    %83 = vmatprep.subr.mxu0 0.0
    %84 = vmatpush1.msra.mxu0 0.0
    %85 = vmatprep.subr.mxu0 0.0
    %86 = vmatpush1.msra.mxu0 0.0
    %87 = vmatprep.subr.mxu0 0.0
    %88 = vmatpush1.msra.mxu0 0.0
    %89 = vmatprep.subr.mxu0 0.0
    %90 = vmatpush1.msra.mxu0 0.0
    %91 = vmatprep.subr.mxu0 0.0
    %92 = vmatpush1.msra.mxu0 0.0
    %93 = vmatprep.subr.mxu0 0.0
    %94 = vmatpush1.msra.mxu0 0.0
    %95 = vmatprep.subr.mxu0 0.0
    %96 = vmatpush1.msra.mxu0 0.0
    %97 = vmatprep.subr.mxu0 0.0
    %98 = vmatpush1.msra.mxu0 0.0
    %99 = vmatprep.subr.mxu0 0.0
    %100 = vmatpush1.msra.mxu0 0.0
    %101 = vmatprep.subr.mxu0 0.0
    %102 = vmatpush1.msra.mxu0 0.0
    %103 = vmatprep.subr.mxu0 0.0
    %104 = vmatpush1.msra.mxu0 0.0
    %105 = vmatprep.subr.mxu0 0.0
    %106 = vmatpush1.msra.mxu0 0.0
    %107 = vmatprep.subr.mxu0 0.0
    %108 = vmatpush1.msra.mxu0 0.0
    %109 = vmatprep.subr.mxu0 0.0
    %110 = vmatpush1.msra.mxu0 0.0
    %111 = vmatprep.subr.mxu0 0.0
    %112 = vmatpush1.msra.mxu0 0.0
    %113 = vmatprep.subr.mxu0 0.0
    %114 = vmatpush1.msra.mxu0 0.0
    %115 = vmatprep.subr.mxu0 0.0
    %116 = vmatpush1.msra.mxu0 0.0
    %117 = vmatprep.subr.mxu0 0.0
    %118 = vmatpush1.msra.mxu0 0.0
    %119 = vmatprep.mubr.f32.mxu0 0.0
    %120 = vmatmul.mubr.f32.gmra.mrb[0].mxu0 %v53
    %v121 = vpop.f32.mrb[0].mxu0
    %v122 = vadd.f32 %v49, %v121
    %v123 = vpop.f32.mrb[0].mxu0
    %124 = vdwg.mxu0
    %v125 = vmax.f32 %v122, 0.0
    %v126 = vld [vmem:[#allocation2] sm:$0xff]
    %v127 = vld [vmem:[#allocation2 + $0x8] sm:$0xff]
    %v128 = vld [vmem:[#allocation2 + $0x10] sm:$0xff]
    %v129 = vld [vmem:[#allocation2 + $0x18] sm:$0xff]
    %v130 = vld [vmem:[#allocation2 + $0x20] sm:$0xff]
    %v131 = vld [vmem:[#allocation2 + $0x28] sm:$0xff]
    %v132 = vld [vmem:[#allocation2 + $0x30] sm:$0xff]
    %v133 = vld [vmem:[#allocation2 + $0x38] sm:$0xff]
    %v134 = vld [vmem:[#allocation2 + $0x40] sm:$0xff]
    %v135 = vld [vmem:[#allocation2 + $0x48] sm:$0xff]
    %v136 = vld [vmem:[#allocation2 + $0x50] sm:$0xff]
    %v137 = vld [vmem:[#allocation2 + $0x58] sm:$0xff]
    %v138 = vld [vmem:[#allocation2 + $0x60] sm:$0xff]
    %v139 = vld [vmem:[#allocation2 + $0x68] sm:$0xff]
    %v140 = vld [vmem:[#allocation2 + $0x70] sm:$0xff]
    %v141 = vld [vmem:[#allocation2 + $0x78] sm:$0xff]
    %v142 = vld [vmem:[%s4] sm:$0x1]
    %v144 = vlaneseq
    %v145 = vshrl.u32 %v144, 7
    %v146 = vsub.s32 0, %v145
    %v147 = vrot.slane %v142, %v146
    %149 = vmatprep.subr.mxu0 0.0
    %150 = vmatpush1.msra.mxu0 %v126
    %151 = vmatprep.subr.mxu0 0.0
    %152 = vmatpush1.msra.mxu0 %v127
    %153 = vmatprep.subr.mxu0 0.0
    %154 = vmatpush1.msra.mxu0 %v128
    %155 = vmatprep.subr.mxu0 0.0
    %156 = vmatpush1.msra.mxu0 %v129
    %157 = vmatprep.subr.mxu0 0.0
    %158 = vmatpush1.msra.mxu0 %v130
    %159 = vmatprep.subr.mxu0 0.0
    %160 = vmatpush1.msra.mxu0 %v131
    %161 = vmatprep.subr.mxu0 0.0
    %162 = vmatpush1.msra.mxu0 %v132
    %163 = vmatprep.subr.mxu0 0.0
    %164 = vmatpush1.msra.mxu0 %v133
    %165 = vmatprep.subr.mxu0 0.0
    %166 = vmatpush1.msra.mxu0 %v134
    %167 = vmatprep.subr.mxu0 0.0
    %168 = vmatpush1.msra.mxu0 %v135
    %169 = vmatprep.subr.mxu0 0.0
    %170 = vmatpush1.msra.mxu0 %v136
    %171 = vmatprep.subr.mxu0 0.0
    %172 = vmatpush1.msra.mxu0 %v137
    %173 = vmatprep.subr.mxu0 0.0
    %174 = vmatpush1.msra.mxu0 %v138
    %175 = vmatprep.subr.mxu0 0.0
    %176 = vmatpush1.msra.mxu0 %v139
    %177 = vmatprep.subr.mxu0 0.0
    %178 = vmatpush1.msra.mxu0 %v140
    %179 = vmatprep.subr.mxu0 0.0
    %180 = vmatpush1.msra.mxu0 %v141
    %181 = vmatprep.subr.mxu0 0.0
    %182 = vmatpush1.msra.mxu0 0.0
    %183 = vmatprep.subr.mxu0 0.0
    %184 = vmatpush1.msra.mxu0 0.0
    %185 = vmatprep.subr.mxu0 0.0
    %186 = vmatpush1.msra.mxu0 0.0
    %187 = vmatprep.subr.mxu0 0.0
    %188 = vmatpush1.msra.mxu0 0.0
    %189 = vmatprep.subr.mxu0 0.0
    %190 = vmatpush1.msra.mxu0 0.0
    %191 = vmatprep.subr.mxu0 0.0
    %192 = vmatpush1.msra.mxu0 0.0
    %193 = vmatprep.subr.mxu0 0.0
    %194 = vmatpush1.msra.mxu0 0.0
    %195 = vmatprep.subr.mxu0 0.0
    %196 = vmatpush1.msra.mxu0 0.0
    %197 = vmatprep.subr.mxu0 0.0
    %198 = vmatpush1.msra.mxu0 0.0
    %199 = vmatprep.subr.mxu0 0.0
    %200 = vmatpush1.msra.mxu0 0.0
    %201 = vmatprep.subr.mxu0 0.0
    %202 = vmatpush1.msra.mxu0 0.0
    %203 = vmatprep.subr.mxu0 0.0
    %204 = vmatpush1.msra.mxu0 0.0
    %205 = vmatprep.subr.mxu0 0.0
    %206 = vmatpush1.msra.mxu0 0.0
    %207 = vmatprep.subr.mxu0 0.0
    %208 = vmatpush1.msra.mxu0 0.0
    %209 = vmatprep.subr.mxu0 0.0
    %210 = vmatpush1.msra.mxu0 0.0
    %211 = vmatprep.subr.mxu0 0.0
    %212 = vmatpush1.msra.mxu0 0.0
    %213 = vmatprep.mubr.f32.mxu0 0.0
    %214 = vmatmul.mubr.f32.gmra.mrb[0].mxu0 %v125
    %v215 = vpop.f32.mrb[0].mxu0
    %v216 = vadd.f32 %v147, %v215
    %v217 = vpop.f32.mrb[0].mxu0
    %218 = vdwg.mxu0
    %v219 = vmax.f32 %v216, 0.0
    %v220 = vadd.f32 %v125, %v219
    %s221 = scalar_lea.vmem [#allocation2], 128
    %v222 = vld [vmem:[%s221] sm:$0xff]
    %v223 = vld [vmem:[%s221 + $0x8] sm:$0xff]
    %v224 = vld [vmem:[%s221 + $0x10] sm:$0xff]
    %v225 = vld [vmem:[%s221 + $0x18] sm:$0xff]
    %v226 = vld [vmem:[%s221 + $0x20] sm:$0xff]
    %v227 = vld [vmem:[%s221 + $0x28] sm:$0xff]
    %v228 = vld [vmem:[%s221 + $0x30] sm:$0xff]
    %v229 = vld [vmem:[%s221 + $0x38] sm:$0xff]
    %v230 = vld [vmem:[%s221 + $0x40] sm:$0xff]
    %v231 = vld [vmem:[%s221 + $0x48] sm:$0xff]
    %v232 = vld [vmem:[%s221 + $0x50] sm:$0xff]
    %v233 = vld [vmem:[%s221 + $0x58] sm:$0xff]
    %v234 = vld [vmem:[%s221 + $0x60] sm:$0xff]
    %v235 = vld [vmem:[%s221 + $0x68] sm:$0xff]
    %v236 = vld [vmem:[%s221 + $0x70] sm:$0xff]
    %v237 = vld [vmem:[%s221 + $0x78] sm:$0xff]
    %s238 = scalar_lea.vmem %s4, 1
    %v239 = vld [vmem:[%s238] sm:$0x1]
    %v241 = vlaneseq
    %v242 = vshrl.u32 %v241, 7
    %v243 = vsub.s32 0, %v242
    %v244 = vrot.slane %v239, %v243
    %246 = vmatprep.subr.mxu0 0.0
    %247 = vmatpush1.msra.mxu0 %v222
    %248 = vmatprep.subr.mxu0 0.0
    %249 = vmatpush1.msra.mxu0 %v223
    %250 = vmatprep.subr.mxu0 0.0
    %251 = vmatpush1.msra.mxu0 %v224
    %252 = vmatprep.subr.mxu0 0.0
    %253 = vmatpush1.msra.mxu0 %v225
    %254 = vmatprep.subr.mxu0 0.0
    %255 = vmatpush1.msra.mxu0 %v226
    %256 = vmatprep.subr.mxu0 0.0
    %257 = vmatpush1.msra.mxu0 %v227
    %258 = vmatprep.subr.mxu0 0.0
    %259 = vmatpush1.msra.mxu0 %v228
    %260 = vmatprep.subr.mxu0 0.0
    %261 = vmatpush1.msra.mxu0 %v229
    %262 = vmatprep.subr.mxu0 0.0
    %263 = vmatpush1.msra.mxu0 %v230
    %264 = vmatprep.subr.mxu0 0.0
    %265 = vmatpush1.msra.mxu0 %v231
    %266 = vmatprep.subr.mxu0 0.0
    %267 = vmatpush1.msra.mxu0 %v232
    %268 = vmatprep.subr.mxu0 0.0
    %269 = vmatpush1.msra.mxu0 %v233
    %270 = vmatprep.subr.mxu0 0.0
    %271 = vmatpush1.msra.mxu0 %v234
    %272 = vmatprep.subr.mxu0 0.0
    %273 = vmatpush1.msra.mxu0 %v235
    %274 = vmatprep.subr.mxu0 0.0
    %275 = vmatpush1.msra.mxu0 %v236
    %276 = vmatprep.subr.mxu0 0.0
    %277 = vmatpush1.msra.mxu0 %v237
    %278 = vmatprep.subr.mxu0 0.0
    %279 = vmatpush1.msra.mxu0 0.0
    %280 = vmatprep.subr.mxu0 0.0
    %281 = vmatpush1.msra.mxu0 0.0
    %282 = vmatprep.subr.mxu0 0.0
    %283 = vmatpush1.msra.mxu0 0.0
    %284 = vmatprep.subr.mxu0 0.0
    %285 = vmatpush1.msra.mxu0 0.0
    %286 = vmatprep.subr.mxu0 0.0
    %287 = vmatpush1.msra.mxu0 0.0
    %288 = vmatprep.subr.mxu0 0.0
    %289 = vmatpush1.msra.mxu0 0.0
    %290 = vmatprep.subr.mxu0 0.0
    %291 = vmatpush1.msra.mxu0 0.0
    %292 = vmatprep.subr.mxu0 0.0
    %293 = vmatpush1.msra.mxu0 0.0
    %294 = vmatprep.subr.mxu0 0.0
    %295 = vmatpush1.msra.mxu0 0.0
    %296 = vmatprep.subr.mxu0 0.0
    %297 = vmatpush1.msra.mxu0 0.0
    %298 = vmatprep.subr.mxu0 0.0
    %299 = vmatpush1.msra.mxu0 0.0
    %300 = vmatprep.subr.mxu0 0.0
    %301 = vmatpush1.msra.mxu0 0.0
    %302 = vmatprep.subr.mxu0 0.0
    %303 = vmatpush1.msra.mxu0 0.0
    %304 = vmatprep.subr.mxu0 0.0
    %305 = vmatpush1.msra.mxu0 0.0
    %306 = vmatprep.subr.mxu0 0.0
    %307 = vmatpush1.msra.mxu0 0.0
    %308 = vmatprep.subr.mxu0 0.0
    %309 = vmatpush1.msra.mxu0 0.0
    %310 = vmatprep.mubr.f32.mxu0 0.0
    %311 = vmatmul.mubr.f32.gmra.mrb[0].mxu0 %v220
    %v312 = vpop.f32.mrb[0].mxu0
    %v313 = vadd.f32 %v244, %v312
    %v314 = vpop.f32.mrb[0].mxu0
    %315 = vdwg.mxu0
    %v316 = vmax.f32 %v313, 0.0
    %v317 = vadd.f32 %v220, %v316
    %s318 = scalar_lea.vmem [#allocation2], 256
    %v319 = vld [vmem:[%s318] sm:$0xff]
    %v320 = vld [vmem:[%s318 + $0x8] sm:$0xff]
    %v321 = vld [vmem:[%s318 + $0x10] sm:$0xff]
    %v322 = vld [vmem:[%s318 + $0x18] sm:$0xff]
    %v323 = vld [vmem:[%s318 + $0x20] sm:$0xff]
    %v324 = vld [vmem:[%s318 + $0x28] sm:$0xff]
    %v325 = vld [vmem:[%s318 + $0x30] sm:$0xff]
    %v326 = vld [vmem:[%s318 + $0x38] sm:$0xff]
    %v327 = vld [vmem:[%s318 + $0x40] sm:$0xff]
    %v328 = vld [vmem:[%s318 + $0x48] sm:$0xff]
    %v329 = vld [vmem:[%s318 + $0x50] sm:$0xff]
    %v330 = vld [vmem:[%s318 + $0x58] sm:$0xff]
    %v331 = vld [vmem:[%s318 + $0x60] sm:$0xff]
    %v332 = vld [vmem:[%s318 + $0x68] sm:$0xff]
    %v333 = vld [vmem:[%s318 + $0x70] sm:$0xff]
    %v334 = vld [vmem:[%s318 + $0x78] sm:$0xff]
    %s335 = scalar_lea.vmem %s4, 2
    %v336 = vld [vmem:[%s335] sm:$0x1]
    %v338 = vlaneseq
    %v339 = vshrl.u32 %v338, 7
    %v340 = vsub.s32 0, %v339
    %v341 = vrot.slane %v336, %v340
    %343 = vmatprep.subr.mxu0 0.0
    %344 = vmatpush1.msra.mxu0 %v319
    %345 = vmatprep.subr.mxu0 0.0
    %346 = vmatpush1.msra.mxu0 %v320
    %347 = vmatprep.subr.mxu0 0.0
    %348 = vmatpush1.msra.mxu0 %v321
    %349 = vmatprep.subr.mxu0 0.0
    %350 = vmatpush1.msra.mxu0 %v322
    %351 = vmatprep.subr.mxu0 0.0
    %352 = vmatpush1.msra.mxu0 %v323
    %353 = vmatprep.subr.mxu0 0.0
    %354 = vmatpush1.msra.mxu0 %v324
    %355 = vmatprep.subr.mxu0 0.0
    %356 = vmatpush1.msra.mxu0 %v325
    %357 = vmatprep.subr.mxu0 0.0
    %358 = vmatpush1.msra.mxu0 %v326
    %359 = vmatprep.subr.mxu0 0.0
    %360 = vmatpush1.msra.mxu0 %v327
    %361 = vmatprep.subr.mxu0 0.0
    %362 = vmatpush1.msra.mxu0 %v328
    %363 = vmatprep.subr.mxu0 0.0
    %364 = vmatpush1.msra.mxu0 %v329
    %365 = vmatprep.subr.mxu0 0.0
    %366 = vmatpush1.msra.mxu0 %v330
    %367 = vmatprep.subr.mxu0 0.0
    %368 = vmatpush1.msra.mxu0 %v331
    %369 = vmatprep.subr.mxu0 0.0
    %370 = vmatpush1.msra.mxu0 %v332
    %371 = vmatprep.subr.mxu0 0.0
    %372 = vmatpush1.msra.mxu0 %v333
    %373 = vmatprep.subr.mxu0 0.0
    %374 = vmatpush1.msra.mxu0 %v334
    %375 = vmatprep.subr.mxu0 0.0
    %376 = vmatpush1.msra.mxu0 0.0
    %377 = vmatprep.subr.mxu0 0.0
    %378 = vmatpush1.msra.mxu0 0.0
    %379 = vmatprep.subr.mxu0 0.0
    %380 = vmatpush1.msra.mxu0 0.0
    %381 = vmatprep.subr.mxu0 0.0
    %382 = vmatpush1.msra.mxu0 0.0
    %383 = vmatprep.subr.mxu0 0.0
    %384 = vmatpush1.msra.mxu0 0.0
    %385 = vmatprep.subr.mxu0 0.0
    %386 = vmatpush1.msra.mxu0 0.0
    %387 = vmatprep.subr.mxu0 0.0
    %388 = vmatpush1.msra.mxu0 0.0
    %389 = vmatprep.subr.mxu0 0.0
    %390 = vmatpush1.msra.mxu0 0.0
    %391 = vmatprep.subr.mxu0 0.0
    %392 = vmatpush1.msra.mxu0 0.0
    %393 = vmatprep.subr.mxu0 0.0
    %394 = vmatpush1.msra.mxu0 0.0
    %395 = vmatprep.subr.mxu0 0.0
    %396 = vmatpush1.msra.mxu0 0.0
    %397 = vmatprep.subr.mxu0 0.0
    %398 = vmatpush1.msra.mxu0 0.0
    %399 = vmatprep.subr.mxu0 0.0
    %400 = vmatpush1.msra.mxu0 0.0
    %401 = vmatprep.subr.mxu0 0.0
    %402 = vmatpush1.msra.mxu0 0.0
    %403 = vmatprep.subr.mxu0 0.0
    %404 = vmatpush1.msra.mxu0 0.0
    %405 = vmatprep.subr.mxu0 0.0
    %406 = vmatpush1.msra.mxu0 0.0
    %407 = vmatprep.mubr.f32.mxu0 0.0
    %408 = vmatmul.mubr.f32.gmra.mrb[0].mxu0 %v317
    %v409 = vpop.f32.mrb[0].mxu0
    %v410 = vadd.f32 %v341, %v409
    %v411 = vpop.f32.mrb[0].mxu0
    %412 = vdwg.mxu0
    %v413 = vmax.f32 %v410, 0.0
    %v414 = vadd.f32 %v317, %v413
    %s415 = scalar_lea.vmem [#allocation2], 384
    %v416 = vld [vmem:[%s415] sm:$0xff]
    %v417 = vld [vmem:[%s415 + $0x8] sm:$0xff]
    %v418 = vld [vmem:[%s415 + $0x10] sm:$0xff]
    %v419 = vld [vmem:[%s415 + $0x18] sm:$0xff]
    %v420 = vld [vmem:[%s415 + $0x20] sm:$0xff]
    %v421 = vld [vmem:[%s415 + $0x28] sm:$0xff]
    %v422 = vld [vmem:[%s415 + $0x30] sm:$0xff]
    %v423 = vld [vmem:[%s415 + $0x38] sm:$0xff]
    %v424 = vld [vmem:[%s415 + $0x40] sm:$0xff]
    %v425 = vld [vmem:[%s415 + $0x48] sm:$0xff]
    %v426 = vld [vmem:[%s415 + $0x50] sm:$0xff]
    %v427 = vld [vmem:[%s415 + $0x58] sm:$0xff]
    %v428 = vld [vmem:[%s415 + $0x60] sm:$0xff]
    %v429 = vld [vmem:[%s415 + $0x68] sm:$0xff]
    %v430 = vld [vmem:[%s415 + $0x70] sm:$0xff]
    %v431 = vld [vmem:[%s415 + $0x78] sm:$0xff]
    %s432 = scalar_lea.vmem %s4, 3
    %v433 = vld [vmem:[%s432] sm:$0x1]
    %v435 = vlaneseq
    %v436 = vshrl.u32 %v435, 7
    %v437 = vsub.s32 0, %v436
    %v438 = vrot.slane %v433, %v437
    %440 = vmatprep.subr.mxu0 0.0
    %441 = vmatpush1.msra.mxu0 %v416
    %442 = vmatprep.subr.mxu0 0.0
    %443 = vmatpush1.msra.mxu0 %v417
    %444 = vmatprep.subr.mxu0 0.0
    %445 = vmatpush1.msra.mxu0 %v418
    %446 = vmatprep.subr.mxu0 0.0
    %447 = vmatpush1.msra.mxu0 %v419
    %448 = vmatprep.subr.mxu0 0.0
    %449 = vmatpush1.msra.mxu0 %v420
    %450 = vmatprep.subr.mxu0 0.0
    %451 = vmatpush1.msra.mxu0 %v421
    %452 = vmatprep.subr.mxu0 0.0
    %453 = vmatpush1.msra.mxu0 %v422
    %454 = vmatprep.subr.mxu0 0.0
    %455 = vmatpush1.msra.mxu0 %v423
    %456 = vmatprep.subr.mxu0 0.0
    %457 = vmatpush1.msra.mxu0 %v424
    %458 = vmatprep.subr.mxu0 0.0
    %459 = vmatpush1.msra.mxu0 %v425
    %460 = vmatprep.subr.mxu0 0.0
    %461 = vmatpush1.msra.mxu0 %v426
    %462 = vmatprep.subr.mxu0 0.0
    %463 = vmatpush1.msra.mxu0 %v427
    %464 = vmatprep.subr.mxu0 0.0
    %465 = vmatpush1.msra.mxu0 %v428
    %466 = vmatprep.subr.mxu0 0.0
    %467 = vmatpush1.msra.mxu0 %v429
    %468 = vmatprep.subr.mxu0 0.0
    %469 = vmatpush1.msra.mxu0 %v430
    %470 = vmatprep.subr.mxu0 0.0
    %471 = vmatpush1.msra.mxu0 %v431
    %472 = vmatprep.subr.mxu0 0.0
    %473 = vmatpush1.msra.mxu0 0.0
    %474 = vmatprep.subr.mxu0 0.0
    %475 = vmatpush1.msra.mxu0 0.0
    %476 = vmatprep.subr.mxu0 0.0
    %477 = vmatpush1.msra.mxu0 0.0
    %478 = vmatprep.subr.mxu0 0.0
    %479 = vmatpush1.msra.mxu0 0.0
    %480 = vmatprep.subr.mxu0 0.0
    %481 = vmatpush1.msra.mxu0 0.0
    %482 = vmatprep.subr.mxu0 0.0
    %483 = vmatpush1.msra.mxu0 0.0
    %484 = vmatprep.subr.mxu0 0.0
    %485 = vmatpush1.msra.mxu0 0.0
    %486 = vmatprep.subr.mxu0 0.0
    %487 = vmatpush1.msra.mxu0 0.0
    %488 = vmatprep.subr.mxu0 0.0
    %489 = vmatpush1.msra.mxu0 0.0
    %490 = vmatprep.subr.mxu0 0.0
    %491 = vmatpush1.msra.mxu0 0.0
    %492 = vmatprep.subr.mxu0 0.0
    %493 = vmatpush1.msra.mxu0 0.0
    %494 = vmatprep.subr.mxu0 0.0
    %495 = vmatpush1.msra.mxu0 0.0
    %496 = vmatprep.subr.mxu0 0.0
    %497 = vmatpush1.msra.mxu0 0.0
    %498 = vmatprep.subr.mxu0 0.0
    %499 = vmatpush1.msra.mxu0 0.0
    %500 = vmatprep.subr.mxu0 0.0
    %501 = vmatpush1.msra.mxu0 0.0
    %502 = vmatprep.subr.mxu0 0.0
    %503 = vmatpush1.msra.mxu0 0.0
    %504 = vmatprep.mubr.f32.mxu0 0.0
    %505 = vmatmul.mubr.f32.gmra.mrb[0].mxu0 %v414
    %v506 = vpop.f32.mrb[0].mxu0
    %v507 = vadd.f32 %v438, %v506
    %v508 = vpop.f32.mrb[0].mxu0
    %509 = vdwg.mxu0
    %v510 = vmax.f32 %v507, 0.0
    %v511 = vadd.f32 %v414, %v510
    %v512 = vld [vmem:[%s5] sm:$0xff]
    %v513 = vld [vmem:[%s5 + $0x8] sm:$0xff]
    %v514 = vld [vmem:[%s5 + $0x10] sm:$0xff]
    %v515 = vld [vmem:[%s5 + $0x18] sm:$0xff]
    %v516 = vld [vmem:[%s5 + $0x20] sm:$0xff]
    %v517 = vld [vmem:[%s5 + $0x28] sm:$0xff]
    %v518 = vld [vmem:[%s5 + $0x30] sm:$0xff]
    %v519 = vld [vmem:[%s5 + $0x38] sm:$0xff]
    %v520 = vld [vmem:[%s5 + $0x40] sm:$0xff]
    %v521 = vld [vmem:[%s5 + $0x48] sm:$0xff]
    %v522 = vld [vmem:[%s5 + $0x50] sm:$0xff]
    %v523 = vld [vmem:[%s5 + $0x58] sm:$0xff]
    %v524 = vld [vmem:[%s5 + $0x60] sm:$0xff]
    %v525 = vld [vmem:[%s5 + $0x68] sm:$0xff]
    %v526 = vld [vmem:[%s5 + $0x70] sm:$0xff]
    %v527 = vld [vmem:[%s5 + $0x78] sm:$0xff]
    %v528 = vld [vmem:[%s6] sm:$0x1]
    %v530 = vlaneseq
    %v531 = vshrl.u32 %v530, 7
    %v532 = vsub.s32 0, %v531
    %v533 = vrot.slane %v528, %v532
    %535 = vmatprep.subr.mxu0 0.0
    %536 = vmatpush1.msra.mxu0 %v512
    %537 = vmatprep.subr.mxu0 0.0
    %538 = vmatpush1.msra.mxu0 %v513
    %539 = vmatprep.subr.mxu0 0.0
    %540 = vmatpush1.msra.mxu0 %v514
    %541 = vmatprep.subr.mxu0 0.0
    %542 = vmatpush1.msra.mxu0 %v515
    %543 = vmatprep.subr.mxu0 0.0
    %544 = vmatpush1.msra.mxu0 %v516
    %545 = vmatprep.subr.mxu0 0.0
    %546 = vmatpush1.msra.mxu0 %v517
    %547 = vmatprep.subr.mxu0 0.0
    %548 = vmatpush1.msra.mxu0 %v518
    %549 = vmatprep.subr.mxu0 0.0
    %550 = vmatpush1.msra.mxu0 %v519
    %551 = vmatprep.subr.mxu0 0.0
    %552 = vmatpush1.msra.mxu0 %v520
    %553 = vmatprep.subr.mxu0 0.0
    %554 = vmatpush1.msra.mxu0 %v521
    %555 = vmatprep.subr.mxu0 0.0
    %556 = vmatpush1.msra.mxu0 %v522
    %557 = vmatprep.subr.mxu0 0.0
    %558 = vmatpush1.msra.mxu0 %v523
    %559 = vmatprep.subr.mxu0 0.0
    %560 = vmatpush1.msra.mxu0 %v524
    %561 = vmatprep.subr.mxu0 0.0
    %562 = vmatpush1.msra.mxu0 %v525
    %563 = vmatprep.subr.mxu0 0.0
    %564 = vmatpush1.msra.mxu0 %v526
    %565 = vmatprep.subr.mxu0 0.0
    %566 = vmatpush1.msra.mxu0 %v527
    %567 = vmatprep.subr.mxu0 0.0
    %568 = vmatpush1.msra.mxu0 0.0
    %569 = vmatprep.subr.mxu0 0.0
    %570 = vmatpush1.msra.mxu0 0.0
    %571 = vmatprep.subr.mxu0 0.0
    %572 = vmatpush1.msra.mxu0 0.0
    %573 = vmatprep.subr.mxu0 0.0
    %574 = vmatpush1.msra.mxu0 0.0
    %575 = vmatprep.subr.mxu0 0.0
    %576 = vmatpush1.msra.mxu0 0.0
    %577 = vmatprep.subr.mxu0 0.0
    %578 = vmatpush1.msra.mxu0 0.0
    %579 = vmatprep.subr.mxu0 0.0
    %580 = vmatpush1.msra.mxu0 0.0
    %581 = vmatprep.subr.mxu0 0.0
    %582 = vmatpush1.msra.mxu0 0.0
    %583 = vmatprep.subr.mxu0 0.0
    %584 = vmatpush1.msra.mxu0 0.0
    %585 = vmatprep.subr.mxu0 0.0
    %586 = vmatpush1.msra.mxu0 0.0
    %587 = vmatprep.subr.mxu0 0.0
    %588 = vmatpush1.msra.mxu0 0.0
    %589 = vmatprep.subr.mxu0 0.0
    %590 = vmatpush1.msra.mxu0 0.0
    %591 = vmatprep.subr.mxu0 0.0
    %592 = vmatpush1.msra.mxu0 0.0
    %593 = vmatprep.subr.mxu0 0.0
    %594 = vmatpush1.msra.mxu0 0.0
    %595 = vmatprep.subr.mxu0 0.0
    %596 = vmatpush1.msra.mxu0 0.0
    %597 = vmatprep.subr.mxu0 0.0
    %598 = vmatpush1.msra.mxu0 0.0
    %599 = vmatprep.mubr.f32.mxu0 0.0
    %600 = vmatmul.mubr.f32.gmra.mrb[0].mxu0 %v511
    %v601 = vpop.f32.mrb[0].mxu0
    %v602 = vadd.f32 %v533, %v601
    %v603 = vpop.f32.mrb[0].mxu0
    %604 = vdwg.mxu0
    %vm605 = vcmask 195584
    %606 = vst.msk [vmem:[#allocation5] sm:$0xff] %vm605, %v602
    // Predicated region
    $region34: #{tpu_custom_call.1} parent=1 // pred_check
      _
    $region35: #{tpu_custom_call.1} parent=1 // pred_check_branch
      %608 = sbr.rel (0) target = $region37
    $region36: #{tpu_custom_call.1} parent=1 // pred_region
      %s610 = ssub.s32 128, 128
      %611 = vsyncadd [#allocation4], %s610
      %s613 = sshll.u32 [#allocation5], 4
      %s614 = int_to_ptr.vmem [resolvable:$true] %s613
      %616 = dma.vmem_to_hbm [thread:$0]  %s614, 128, %s7, [#allocation4]
    $region37: #{tpu_custom_call.1} parent=1 // pred_fallthru
      _
    // Predicated region
    $region38: #{tpu_custom_call.1} parent=1 // pred_check
      _
    $region39: #{tpu_custom_call.1} parent=1 // pred_check_branch
      %618 = sbr.rel (0) target = $region41
    $region40: #{tpu_custom_call.1} parent=1 // pred_region
      %619 = dma.done [#allocation4], 128
    $region41: #{tpu_custom_call.1} parent=1 // pred_fallthru
      _
    %620 = vsyncpa [#allocation3], 1
    %621 = vsyncpa [#allocation4], 1

</llo_original>
